<compile_context>
chip_gen: v6e
topology: v6e:2x2x1
jax: 0.10.0
libtpu: 0.0.40
codegen_flags: <defaults>
</compile_context>

<pallas_src>
import functools

import jax
import jax.numpy as jnp
from jax.experimental import pallas as pl
from jax.experimental.pallas import tpu as pltpu


def gat_kernel(x_ref, adj_ref, w_ref, a_ref, o_ref, *, alpha, concat, neg_fill):
    """One batch element per grid step.

    x_ref   : (1, N, Cin)   node features for this graph
    adj_ref : (1, N, N)     adjacency (float; >0 means edge)
    w_ref   : (Cin, F)      projection weight (resident across grid)
    a_ref   : (F, 2)        attention vectors, columns = [a_src, a_dst]
    o_ref   : (1, N, F)     output node features
    """
    x = x_ref[0].astype(jnp.float32)            # (N, Cin)
    w = w_ref[...].astype(jnp.float32)          # (Cin, F)

    # ---- h = x @ W  (single MXU matmul, f32 accumulation) ----
    h = jnp.dot(x, w, preferred_element_type=jnp.float32)          # (N, F)

    # ---- attention logits: e[i,j] = h_i . a_src + h_j . a_dst ----
    scores = jnp.dot(h, a_ref[...].astype(jnp.float32),
                     preferred_element_type=jnp.float32)            # (N, 2)
    f_src = scores[:, 0:1]                      # (N, 1) — varies with i
    f_dst = scores[:, 1:2].T                    # (1, N) — varies with j
    e = f_src + f_dst                           # (N, N)
    e = jnp.where(e > 0, e, alpha * e)          # LeakyReLU(alpha)

    # ---- mask by adjacency and row-softmax over j ----
    adj = adj_ref[0]                            # (N, N)
    logits = jnp.where(adj > 0, e, neg_fill)
    m = jnp.max(logits, axis=-1, keepdims=True)
    p = jnp.exp(logits - m)
    denom = jnp.sum(p, axis=-1, keepdims=True)
    attn = p / denom                            # (N, N)

    # ---- aggregate: h' = attn @ h  (single MXU matmul) ----
    h_prime = jnp.dot(attn, h, preferred_element_type=jnp.float32)  # (N, F)
    if concat:
        h_prime = jnp.maximum(h_prime, 0.0)

    o_ref[0, :, :] = h_prime.astype(o_ref.dtype)


def graph_attention(x, adj, W, a, *, alpha, concat=True):
    """x: (B, N, Cin). adj: (B, N, N). W: (Cin, F). a: (2F, 1)."""
    B, N, Cin = x.shape
    F_out = W.shape[1]
    assert a.shape == (2 * F_out, 1)

    # a (2F,1) -> (F,2): column 0 multiplies h_i, column 1 multiplies h_j.
    a_pair = a.reshape(2, F_out).T
    adj_f = adj.astype(jnp.float32)

    kernel = functools.partial(
        gat_kernel, alpha=float(alpha), concat=bool(concat), neg_fill=-1e12)

    out = pl.pallas_call(
        kernel,
        out_shape=jax.ShapeDtypeStruct((B, N, F_out), x.dtype),
        grid_spec=pltpu.PrefetchScalarGridSpec(
            num_scalar_prefetch=0,
            grid=(B,),
            in_specs=[
                pl.BlockSpec((1, N, Cin), lambda b: (b, 0, 0)),
                pl.BlockSpec((1, N, N), lambda b: (b, 0, 0)),
                pl.BlockSpec((Cin, F_out), lambda b: (0, 0)),   # resident
                pl.BlockSpec((F_out, 2), lambda b: (0, 0)),     # resident
            ],
            out_specs=pl.BlockSpec((1, N, F_out), lambda b: (b, 0, 0)),
        ),
        compiler_params=pltpu.CompilerParams(
            dimension_semantics=("parallel",),
            vmem_limit_bytes=32 * 1024 * 1024),
    )(x, adj_f, W, a_pair)
    return out


def reference_gat(x, adj, W, a, *, alpha, concat=True):
    """Pure-JAX mirror of the PyTorch forward (builds a_input explicitly)."""
    B, N, _ = x.shape
    F_out = W.shape[1]
    h = jnp.einsum("bnc,cf->bnf", x, W)
    h_i = jnp.repeat(h, N, axis=1)                      # row i*N+j = h_i
    h_j = jnp.tile(h, (1, N, 1))                        # row i*N+j = h_j
    a_input = jnp.concatenate([h_i, h_j], axis=-1).reshape(B, N, N, 2 * F_out)
    e = jnp.squeeze(a_input @ a, axis=-1)
    e = jnp.where(e > 0, e, alpha * e)                  # LeakyReLU
    att = jnp.where(adj > 0, e, -1e12)
    att = jax.nn.softmax(att, axis=2)
    h_prime = jnp.einsum("bij,bjf->bif", att, h)
    return jnp.maximum(h_prime, 0.0) if concat else h_prime


if __name__ == "__main__":
    # Small shapes consistent with the module: B graphs, N nodes,
    # in_features -> out_features, LeakyReLU slope alpha, concat=True.
    B, N, Cin, F_out = 2, 8, 16, 32
    alpha = 0.2
    concat = True
    # NOTE: self.dropout is stored by the module but never applied in forward.

    key = jax.random.PRNGKey(0)
    kx, ka, kw, kav = jax.random.split(key, 4)

    x = jax.random.normal(kx, (B, N, Cin), dtype=jnp.float32)
    adj = (jax.random.uniform(ka, (B, N, N)) > 0.5).astype(jnp.float32)

    # Xavier-uniform-style init (gain=1.414), deterministic.
    bw = 1.414 * (6.0 / (Cin + F_out)) ** 0.5
    W = jax.random.uniform(kw, (Cin, F_out), jnp.float32, -bw, bw)
    ba = 1.414 * (6.0 / (2 * F_out + 1)) ** 0.5
    a = jax.random.uniform(kav, (2 * F_out, 1), jnp.float32, -ba, ba)

    out = graph_attention(x, adj, W, a, alpha=alpha, concat=concat)
    out = jax.block_until_ready(out)

    ref = reference_gat(x, adj, W, a, alpha=alpha, concat=concat)
    assert out.shape == (B, N, F_out) and out.dtype == x.dtype
    assert jnp.allclose(out, ref, atol=1e-4, rtol=1e-4), \
        f"max abs err {jnp.max(jnp.abs(out - ref))}"

    print("KERNEL_OK")
</pallas_src>

<mosaic_0001>
module attributes {stable_mosaic.version = 11 : i64} {
  func.func @gat_kernel(%arg0: i32, %arg1: memref<1x8x16xf32, #tpu.memory_space<vmem>>, %arg2: memref<1x8x8xf32, #tpu.memory_space<vmem>>, %arg3: memref<16x32xf32, #tpu.memory_space<vmem>>, %arg4: memref<32x2xf32, #tpu.memory_space<vmem>>, %arg5: memref<1x8x32xf32, #tpu.memory_space<vmem>>) attributes {dimension_semantics = [#tpu.dimension_semantics<parallel>], iteration_bounds = array<i64: 2>, scalar_prefetch = 0 : i64, scratch_operands = 0 : i64, tpu.core_type = #tpu.core_type<tc>, window_params = [{transform_indices = @transform_0, window_bounds = array<i64: 1, 8, 16>}, {transform_indices = @transform_1, window_bounds = array<i64: 1, 8, 8>}, {pipeline_mode = #tpu.pipeline_mode<synchronous>, transform_indices = @transform_2, window_bounds = array<i64: 16, 32>}, {pipeline_mode = #tpu.pipeline_mode<synchronous>, transform_indices = @transform_3, window_bounds = array<i64: 32, 2>}, {transform_indices = @transform_4, window_bounds = array<i64: 1, 8, 32>}]} {
    %c0 = arith.constant 0 : index
    %c0_0 = arith.constant 0 : index
    %c0_1 = arith.constant 0 : index
    %0 = vector.load %arg1[%c0, %c0_0, %c0_1] : memref<1x8x16xf32, #tpu.memory_space<vmem>>, vector<1x8x16xf32>
    %1 = vector.shape_cast %0 : vector<1x8x16xf32> to vector<8x16xf32>
    %c0_2 = arith.constant 0 : index
    %c0_3 = arith.constant 0 : index
    %2 = vector.load %arg3[%c0_2, %c0_3] : memref<16x32xf32, #tpu.memory_space<vmem>>, vector<16x32xf32>
    %cst = arith.constant dense<0.000000e+00> : vector<8x32xf32>
    %3 = tpu.matmul %1, %2, %cst {dimension_numbers = #tpu.dot_dimension_numbers<[1], [0], [0], [1], [0, 0, 1, 1], [], []>} : vector<8x16xf32>, vector<16x32xf32>, vector<8x32xf32> -> vector<8x32xf32>
    %c0_4 = arith.constant 0 : index
    %c0_5 = arith.constant 0 : index
    %4 = vector.load %arg4[%c0_4, %c0_5] : memref<32x2xf32, #tpu.memory_space<vmem>>, vector<32x2xf32>
    %cst_6 = arith.constant dense<0.000000e+00> : vector<8x2xf32>
    %5 = tpu.matmul %3, %4, %cst_6 {dimension_numbers = #tpu.dot_dimension_numbers<[1], [0], [0], [1], [0, 0, 1, 1], [], []>} : vector<8x32xf32>, vector<32x2xf32>, vector<8x2xf32> -> vector<8x2xf32>
    %6 = vector.extract_strided_slice %5 {offsets = [0, 0], sizes = [8, 1], strides = [1, 1]} : vector<8x2xf32> to vector<8x1xf32>
    %7 = vector.extract_strided_slice %5 {offsets = [0, 1], sizes = [8, 1], strides = [1, 1]} : vector<8x2xf32> to vector<8x1xf32>
    %8 = tpu.transpose %7, [1, 0] : vector<8x1xf32> -> vector<1x8xf32>
    %9 = vector.broadcast %6 : vector<8x1xf32> to vector<8x8xf32>
    %10 = vector.broadcast %8 : vector<1x8xf32> to vector<8x8xf32>
    %11 = arith.addf %9, %10 : vector<8x8xf32>
    %cst_7 = arith.constant 0.000000e+00 : f32
    %12 = vector.broadcast %cst_7 : f32 to vector<8x8xf32>
    %13 = arith.cmpf ogt, %11, %12 : vector<8x8xf32>
    %cst_8 = arith.constant 2.000000e-01 : f32
    %14 = vector.broadcast %cst_8 : f32 to vector<8x8xf32>
    %15 = arith.mulf %14, %11 : vector<8x8xf32>
    %16 = arith.select %13, %11, %15 : vector<8x8xi1>, vector<8x8xf32>
    %c0_9 = arith.constant 0 : index
    %c0_10 = arith.constant 0 : index
    %c0_11 = arith.constant 0 : index
    %17 = vector.load %arg2[%c0_9, %c0_10, %c0_11] : memref<1x8x8xf32, #tpu.memory_space<vmem>>, vector<1x8x8xf32>
    %18 = vector.shape_cast %17 : vector<1x8x8xf32> to vector<8x8xf32>
    %cst_12 = arith.constant 0.000000e+00 : f32
    %19 = vector.broadcast %cst_12 : f32 to vector<8x8xf32>
    %20 = arith.cmpf ogt, %18, %19 : vector<8x8xf32>
    %cst_13 = arith.constant -9.99999995E+11 : f32
    %21 = vector.broadcast %cst_13 : f32 to vector<8x8xf32>
    %22 = arith.select %20, %16, %21 : vector<8x8xi1>, vector<8x8xf32>
    %cst_14 = arith.constant dense<0xFF800000> : vector<8xf32>
    %23 = vector.multi_reduction <maximumf>, %22, %cst_14 [1] : vector<8x8xf32> to vector<8xf32>
    %24 = vector.shape_cast %23 : vector<8xf32> to vector<8x1xf32>
    %25 = vector.broadcast %24 : vector<8x1xf32> to vector<8x8xf32>
    %26 = arith.subf %22, %25 : vector<8x8xf32>
    %27 = math.exp %26 : vector<8x8xf32>
    %cst_15 = arith.constant dense<0.000000e+00> : vector<8xf32>
    %28 = vector.multi_reduction <add>, %27, %cst_15 [1] : vector<8x8xf32> to vector<8xf32>
    %29 = vector.shape_cast %28 : vector<8xf32> to vector<8x1xf32>
    %30 = vector.broadcast %29 : vector<8x1xf32> to vector<8x8xf32>
    %31 = arith.divf %27, %30 : vector<8x8xf32>
    %cst_16 = arith.constant dense<0.000000e+00> : vector<8x32xf32>
    %32 = tpu.matmul %31, %3, %cst_16 {dimension_numbers = #tpu.dot_dimension_numbers<[1], [0], [0], [1], [0, 0, 1, 1], [], []>} : vector<8x8xf32>, vector<8x32xf32>, vector<8x32xf32> -> vector<8x32xf32>
    %cst_17 = arith.constant 0.000000e+00 : f32
    %33 = vector.broadcast %cst_17 : f32 to vector<8x32xf32>
    %34 = arith.maximumf %32, %33 : vector<8x32xf32>
    %c0_18 = arith.constant 0 : index
    %c0_19 = arith.constant 0 : index
    %c0_20 = arith.constant 0 : index
    %35 = vector.load %arg5[%c0_18, %c0_19, %c0_20] : memref<1x8x32xf32, #tpu.memory_space<vmem>>, vector<1x8x32xf32>
    %36 = vector.shape_cast %35 : vector<1x8x32xf32> to vector<8x32xf32>
    %37 = vector.shape_cast %34 : vector<8x32xf32> to vector<1x8x32xf32>
    tpu.vector_store %arg5[%c0_18, %c0_19, %c0_20], %37 {strides = array<i32>} : memref<1x8x32xf32, #tpu.memory_space<vmem>>, vector<1x8x32xf32>,
    return
  }
  func.func @transform_0(%arg0: i32) -> (i32, i32, i32) {
    %c0_i32 = arith.constant 0 : i32
    %c0_i32_0 = arith.constant 0 : i32
    %c0_i32_1 = arith.constant 0 : i32
    return %arg0, %c0_i32, %c0_i32_0 : i32, i32, i32
  }
  func.func @transform_1(%arg0: i32) -> (i32, i32, i32) {
    %c0_i32 = arith.constant 0 : i32
    %c0_i32_0 = arith.constant 0 : i32
    %c0_i32_1 = arith.constant 0 : i32
    return %arg0, %c0_i32, %c0_i32_0 : i32, i32, i32
  }
  func.func @transform_2(%arg0: i32) -> (i32, i32) {
    %c0_i32 = arith.constant 0 : i32
    %c0_i32_0 = arith.constant 0 : i32
    %c0_i32_1 = arith.constant 0 : i32
    return %c0_i32, %c0_i32_0 : i32, i32
  }
  func.func @transform_3(%arg0: i32) -> (i32, i32) {
    %c0_i32 = arith.constant 0 : i32
    %c0_i32_0 = arith.constant 0 : i32
    %c0_i32_1 = arith.constant 0 : i32
    return %c0_i32, %c0_i32_0 : i32, i32
  }
  func.func @transform_4(%arg0: i32) -> (i32, i32, i32) {
    %c0_i32 = arith.constant 0 : i32
    %c0_i32_0 = arith.constant 0 : i32
    %c0_i32_1 = arith.constant 0 : i32
    return %arg0, %c0_i32, %c0_i32_0 : i32, i32, i32
  }
}

</mosaic_0001>

<llo_original>
// kernel: tpu_custom_call.1
$region0: #{tpu_custom_call.1}
  #allocation0 [shape = 'u32[]', space=smem, size = 0x4, offset = 0x4, fixed_abs, tag = 'smem constant byte address 0x4 - core index']
  #allocation1 [shape = 'u32[144,128]{1,0:T(1,128)}', space=vmem, size = 0x12000, scoped, tag = 'internal scratch']
  %s0 = inlined_call_operand.vmem [shape: f32[2,8,16], index: 0, kind: input, shape index: {}]
  %s1 = inlined_call_operand.vmem [shape: f32[2,8,8], index: 1, kind: input, shape index: {}]
  %s2 = inlined_call_operand.hbm [shape: f32[16,32], index: 2, kind: input, shape index: {}]
  %s3 = inlined_call_operand.vmem [shape: f32[32,2], index: 3, kind: input, shape index: {}]
  %s4 = inlined_call_operand.hbm [shape: f32[2,8,32], index: 4, kind: output, shape index: {}]
  %s5 = sld [smem:[#allocation0]]
  $region53: #{tpu_custom_call.1} parent=0
    _
  %s7 = ssub.s32 1, %s5
  %s8 = scalar_select 0, %s7, %s5
  $region1: #{tpu_custom_call.1} parent=0
    #allocation2 [shape = 'u8[8192]{0}', space=vmem, size = 0x2000, scoped, tag = 'input window, operand 2, single buffered']
    #allocation3 [shape = 's32[2]{0}', space=sflag, size = 0x8, scoped, tag = 'scoped memory for tpu_custom_call.1']
    #allocation4 [shape = 's32[2]{0}', space=sflag, size = 0x8, scoped, tag = 'scoped memory for tpu_custom_call.1']
    #allocation5 [shape = 'u8[8192]{0}', space=vmem, size = 0x2000, scoped, tag = 'output window, operand 0']
    %9 = vsyncpa [#allocation3], 0
    %10 = vsyncpa [#allocation4], 0
    %s11 = scalar_lea.sflag [#allocation4], 1
    %12 = vsyncpa %s11, 0
    loop: start=0, step=1, limit=4
    $region2: #{tpu_custom_call.1} parent=1 // loop_pre_header
      _
    $region3: #{tpu_custom_call.1} parent=1 // loop_header
      %s14 = sphi 0, %s18
      %p15 = scmp.ge.s32.totalorder %s14, 4
      %s24 = sphi 0, %s26
      %s27 = sphi 0, %s24
      %s28 = sphi 0, %s27
      %s44 = sphi 0, %s28
      %s50 = sphi 0, %s52
      %s53 = sphi 0, %s50
      %s54 = sphi 0, %s53
      %s70 = sphi 0, %s54
      %s74 = sphi 0, %s74
      %s76 = sphi 0, %s74
      %s77 = sphi 0, %s76
      %s91 = sphi 0, %s77
      %s95 = sphi 0, %s95
      %s97 = sphi 0, %s95
      %s98 = sphi 0, %s97
      %s112 = sphi 0, %s98
      %s118 = sphi 0, %s120
      %s121 = sphi 0, %s118
      %s122 = sphi 0, %s121
      %s138 = sphi 0, %s122
    $region4: #{tpu_custom_call.1} parent=1 // loop_header_branch
      %17 = sbr.rel (%p15) target = $region8
    $region5: #{tpu_custom_call.1} parent=1 // loop_body
      %s19 = ssub.s32 %s14, 1
      %s20 = ssub.s32 %s14, 2
      %s21 = sadd.s32 %s14, 1
      %s22 = ssub.s32 %s14, %s21
      %p23 = scmp.eq.s32.totalorder %s22, 0
      %s25 = sadd.s32 %s24, 1
      %s26 = scalar_select %p23, %s24, %s25
      %p29 = pneg %p23
      %p30 = scmp.eq.s32.totalorder %s14, 1
      %p31 = por %p29, %p30
      %p32 = scmp.ne.s32.totalorder %s24, %s27
      %p33 = scmp.eq.s32.totalorder %s14, 0
      %p34 = por %p32, %p33
      %p35 = scmp.ne.s32.totalorder %s24, %s27
      %p36 = scmp.eq.s32.totalorder %s19, 1
      %p37 = por %p35, %p36
      %p38 = scmp.ne.s32.totalorder %s27, %s28
      %p39 = scmp.eq.s32.totalorder %s19, 0
      %p40 = por %p38, %p39
      %p41 = scmp.ne.s32.totalorder %s27, %s28
      %p42 = scmp.eq.s32.totalorder %s20, 1
      %p43 = por %p41, %p42
      %p45 = scmp.ne.s32.totalorder %s28, %s44
      %p46 = scmp.eq.s32.totalorder %s20, 0
      %p47 = por %p45, %p46
      %s48 = ssub.s32 %s14, %s21
      %p49 = scmp.eq.s32.totalorder %s48, 0
      %s51 = sadd.s32 %s50, 1
      %s52 = scalar_select %p49, %s50, %s51
      %p55 = pneg %p49
      %p56 = scmp.eq.s32.totalorder %s14, 1
      %p57 = por %p55, %p56
      %p58 = scmp.ne.s32.totalorder %s50, %s53
      %p59 = scmp.eq.s32.totalorder %s14, 0
      %p60 = por %p58, %p59
      %p61 = scmp.ne.s32.totalorder %s50, %s53
      %p62 = scmp.eq.s32.totalorder %s19, 1
      %p63 = por %p61, %p62
      %p64 = scmp.ne.s32.totalorder %s53, %s54
      %p65 = scmp.eq.s32.totalorder %s19, 0
      %p66 = por %p64, %p65
      %p67 = scmp.ne.s32.totalorder %s53, %s54
      %p68 = scmp.eq.s32.totalorder %s20, 1
      %p69 = por %p67, %p68
      %p71 = scmp.ne.s32.totalorder %s54, %s70
      %p72 = scmp.eq.s32.totalorder %s20, 0
      %p73 = por %p71, %p72
      %s75 = sadd.s32 %s74, 1
      %p78 = scmp.eq.s32.totalorder %s14, 1
      %p79 = scmp.ne.s32.totalorder %s74, %s76
      %p80 = scmp.eq.s32.totalorder %s14, 0
      %p81 = por %p79, %p80
      %p82 = scmp.ne.s32.totalorder %s74, %s76
      %p83 = scmp.eq.s32.totalorder %s19, 1
      %p84 = por %p82, %p83
      %p85 = scmp.ne.s32.totalorder %s76, %s77
      %p86 = scmp.eq.s32.totalorder %s19, 0
      %p87 = por %p85, %p86
      %p88 = scmp.ne.s32.totalorder %s76, %s77
      %p89 = scmp.eq.s32.totalorder %s20, 1
      %p90 = por %p88, %p89
      %p92 = scmp.ne.s32.totalorder %s77, %s91
      %p93 = scmp.eq.s32.totalorder %s20, 0
      %p94 = por %p92, %p93
      %s96 = sadd.s32 %s95, 1
      %p99 = scmp.eq.s32.totalorder %s14, 1
      %p100 = scmp.ne.s32.totalorder %s95, %s97
      %p101 = scmp.eq.s32.totalorder %s14, 0
      %p102 = por %p100, %p101
      %p103 = scmp.ne.s32.totalorder %s95, %s97
      %p104 = scmp.eq.s32.totalorder %s19, 1
      %p105 = por %p103, %p104
      %p106 = scmp.ne.s32.totalorder %s97, %s98
      %p107 = scmp.eq.s32.totalorder %s19, 0
      %p108 = por %p106, %p107
      %p109 = scmp.ne.s32.totalorder %s97, %s98
      %p110 = scmp.eq.s32.totalorder %s20, 1
      %p111 = por %p109, %p110
      %p113 = scmp.ne.s32.totalorder %s98, %s112
      %p114 = scmp.eq.s32.totalorder %s20, 0
      %p115 = por %p113, %p114
      %s116 = ssub.s32 %s14, %s21
      %p117 = scmp.eq.s32.totalorder %s116, 0
      %s119 = sadd.s32 %s118, 1
      %s120 = scalar_select %p117, %s118, %s119
      %p123 = pneg %p117
      %p124 = scmp.eq.s32.totalorder %s14, 1
      %p125 = por %p123, %p124
      %p126 = scmp.ne.s32.totalorder %s118, %s121
      %p127 = scmp.eq.s32.totalorder %s14, 0
      %p128 = por %p126, %p127
      %p129 = scmp.ne.s32.totalorder %s118, %s121
      %p130 = scmp.eq.s32.totalorder %s19, 1
      %p131 = por %p129, %p130
      %p132 = scmp.ne.s32.totalorder %s121, %s122
      %p133 = scmp.eq.s32.totalorder %s19, 0
      %p134 = por %p132, %p133
      %p135 = scmp.ne.s32.totalorder %s121, %s122
      %p136 = scmp.eq.s32.totalorder %s20, 1
      %p137 = por %p135, %p136
      %p139 = scmp.ne.s32.totalorder %s122, %s138
      %p140 = scmp.eq.s32.totalorder %s20, 0
      %p141 = por %p139, %p140
      %p142 = scmp.le.s32.totalorder 1, %s14
      %p143 = scmp.lt.s32.totalorder %s14, 3
      %p144 = pnand %p142, %p143
      %p145 = pneg %p144
      // Predicated region
      $region9: #{tpu_custom_call.1} parent=5 // pred_check
        _
      $region10: #{tpu_custom_call.1} parent=5 // pred_check_branch
        %147 = sbr.rel (%p144) target = $region12
      $region11: #{tpu_custom_call.1} parent=5 // pred_region
        %s148 = ssub.s32 %s14, 1
        // Predicated region
        $region13: #{tpu_custom_call.1} parent=11 // pred_check
          %p149 = pneg %p87
        $region14: #{tpu_custom_call.1} parent=11 // pred_check_branch
          %151 = sbr.rel (%p149) target = $region16
        $region15: #{tpu_custom_call.1} parent=11 // pred_region
          %s153 = ssub.s32 256, 256
          %154 = vsyncadd [#allocation3], %s153
          %s155 = sshll.u32 [#allocation2], 4
          %s156 = int_to_ptr.vmem [resolvable:$true] %s155
          %161 = dma.hbm_to_vmem [thread:$0]  %s2, 256, %s156, [#allocation3], 128, 128, 8
        $region16: #{tpu_custom_call.1} parent=11 // pred_fallthru
          _
        // Predicated region
        $region17: #{tpu_custom_call.1} parent=11 // pred_check
          %p162 = pneg %p108
        $region18: #{tpu_custom_call.1} parent=11 // pred_check_branch
          %164 = sbr.rel (%p162) target = $region20
        $region19: #{tpu_custom_call.1} parent=11 // pred_region
          _
        $region20: #{tpu_custom_call.1} parent=11 // pred_fallthru
          _
      $region12: #{tpu_custom_call.1} parent=5 // pred_fallthru
        _
      %p165 = scmp.lt.s32.totalorder %s14, 2
      // Predicated region
      $region21: #{tpu_custom_call.1} parent=5 // pred_check
        %p166 = pneg %p165
      $region22: #{tpu_custom_call.1} parent=5 // pred_check_branch
        %168 = sbr.rel (%p166) target = $region24
      $region23: #{tpu_custom_call.1} parent=5 // pred_region
        // Predicated region
        $region25: #{tpu_custom_call.1} parent=23 // pred_check
          %p169 = pneg %p34
        $region26: #{tpu_custom_call.1} parent=23 // pred_check_branch
          %171 = sbr.rel (%p169) target = $region28
        $region27: #{tpu_custom_call.1} parent=23 // pred_region
          %p172 = scmp.lt.s32.totalorder %s14, 1
          %s173 = scalar_select %p172, %s14, 1
          %s174 = smul.addr %s173, 8
          %s175 = scalar_lea.vmem %s0, %s174
        $region28: #{tpu_custom_call.1} parent=23 // pred_fallthru
          _
        // Predicated region
        $region29: #{tpu_custom_call.1} parent=23 // pred_check
          %p176 = pneg %p60
        $region30: #{tpu_custom_call.1} parent=23 // pred_check_branch
          %178 = sbr.rel (%p176) target = $region32
        $region31: #{tpu_custom_call.1} parent=23 // pred_region
          %p179 = scmp.lt.s32.totalorder %s14, 1
          %s180 = scalar_select %p179, %s14, 1
          %s181 = smul.addr %s180, 8
          %s182 = scalar_lea.vmem %s1, %s181
        $region32: #{tpu_custom_call.1} parent=23 // pred_fallthru
          _
      $region24: #{tpu_custom_call.1} parent=5 // pred_fallthru
        _
      %p183 = scmp.le.s32.totalorder 1, %s14
      %p184 = scmp.lt.s32.totalorder %s14, 3
      %p185 = pnand %p183, %p184
      %p186 = pneg %p185
      // Predicated region
      $region33: #{tpu_custom_call.1} parent=5 // pred_check
        _
      $region34: #{tpu_custom_call.1} parent=5 // pred_check_branch
        %188 = sbr.rel (%p185) target = $region36
      $region35: #{tpu_custom_call.1} parent=5 // pred_region
        %s189 = ssub.s32 %s14, 1
        // Predicated region
        $region37: #{tpu_custom_call.1} parent=35 // pred_check
          %p190 = pneg %p87
        $region38: #{tpu_custom_call.1} parent=35 // pred_check_branch
          %192 = sbr.rel (%p190) target = $region40
        $region39: #{tpu_custom_call.1} parent=35 // pred_region
          %193 = dma.done [#allocation3], 256
        $region40: #{tpu_custom_call.1} parent=35 // pred_fallthru
          _
        %p194 = scmp.lt.s32.totalorder %s19, 1
        %s195 = scalar_select %p194, %s19, 1
        %s196 = smul.addr %s195, 8
        %s197 = scalar_lea.vmem %s0, %s196
        %p198 = pneg %p40
        %p199 = pneg %p37
        %p200 = scmp.lt.s32.totalorder %s19, 1
        %s201 = scalar_select %p200, %s19, 1
        %s202 = smul.addr %s201, 8
        %s203 = scalar_lea.vmem %s1, %s202
        %p204 = pneg %p66
        %p205 = pneg %p63
        %p206 = pneg %p87
        %p207 = pneg %p84
        %p208 = pneg %p108
        %p209 = pneg %p105
        %p210 = pneg %p134
        %p211 = pneg %p131
        %s212 = sand.u32 %s121, 1
        %s213 = scalar_lea.sflag [#allocation4], %s212
        %s214 = sand.u32 %s121, 1
        %s215 = smul.addr %s214, 8
        %s216 = scalar_lea.vmem [#allocation5], %s215
        %p217 = scmp.lt.s32.totalorder %s19, 1
        %s218 = scalar_select %p217, %s19, 1
        %s219 = smul.addr %s218, 8
        %s220 = scalar_lea.vmem %s0, %s219
        %p221 = scmp.lt.s32.totalorder %s19, 1
        %s222 = scalar_select %p221, %s19, 1
        %s223 = smul.addr %s222, 8
        %s224 = scalar_lea.vmem %s1, %s223
        %v225 = vld [vmem:[%s220] sm:$0xff]
        %v226 = vld [vmem:[#allocation2] sm:$0xff]
        %v227 = vld [vmem:[#allocation2 + $0x8] sm:$0xff]
        %vm228 = vcmask 130048
        %v230 = vsel %vm228, %v225, 0
        %232 = vmatprep.subr.mxu0 0.0
        %233 = vmatpush1.msra.mxu0 0.0
        %234 = vmatprep.subr.mxu0 0.0
        %235 = vmatpush1.msra.mxu0 0.0
        %236 = vmatprep.subr.mxu0 0.0
        %237 = vmatpush1.msra.mxu0 0.0
        %238 = vmatprep.subr.mxu0 0.0
        %239 = vmatpush1.msra.mxu0 0.0
        %240 = vmatprep.subr.mxu0 0.0
        %241 = vmatpush1.msra.mxu0 0.0
        %242 = vmatprep.subr.mxu0 0.0
        %243 = vmatpush1.msra.mxu0 0.0
        %244 = vmatprep.subr.mxu0 0.0
        %245 = vmatpush1.msra.mxu0 0.0
        %246 = vmatprep.subr.mxu0 0.0
        %247 = vmatpush1.msra.mxu0 0.0
        %248 = vmatprep.subr.mxu0 0.0
        %249 = vmatpush1.msra.mxu0 0.0
        %250 = vmatprep.subr.mxu0 0.0
        %251 = vmatpush1.msra.mxu0 0.0
        %252 = vmatprep.subr.mxu0 0.0
        %253 = vmatpush1.msra.mxu0 0.0
        %254 = vmatprep.subr.mxu0 0.0
        %255 = vmatpush1.msra.mxu0 0.0
        %256 = vmatprep.subr.mxu0 0.0
        %257 = vmatpush1.msra.mxu0 0.0
        %258 = vmatprep.subr.mxu0 0.0
        %259 = vmatpush1.msra.mxu0 0.0
        %260 = vmatprep.subr.mxu0 0.0
        %261 = vmatpush1.msra.mxu0 %v227
        %262 = vmatprep.subr.mxu0 0.0
        %263 = vmatpush1.msra.mxu0 %v226
        %264 = vmatprep.subr.mxu0 0.0
        %265 = vmatpush2.msra.mxu0 0.0
        %266 = vmatprep.subr.mxu0 0.0
        %267 = vmatpush2.msra.mxu0 0.0
        %268 = vmatprep.subr.mxu0 0.0
        %269 = vmatpush2.msra.mxu0 0.0
        %270 = vmatprep.subr.mxu0 0.0
        %271 = vmatpush2.msra.mxu0 0.0
        %272 = vmatprep.subr.mxu0 0.0
        %273 = vmatpush2.msra.mxu0 0.0
        %274 = vmatprep.subr.mxu0 0.0
        %275 = vmatpush2.msra.mxu0 0.0
        %276 = vmatprep.subr.mxu0 0.0
        %277 = vmatpush2.msra.mxu0 0.0
        %278 = vmatprep.subr.mxu0 0.0
        %279 = vmatpush2.msra.mxu0 0.0
        %280 = vmatprep.subr.mxu0 0.0
        %281 = vmatpush2.msra.mxu0 0.0
        %282 = vmatprep.subr.mxu0 0.0
        %283 = vmatpush2.msra.mxu0 0.0
        %284 = vmatprep.subr.mxu0 0.0
        %285 = vmatpush2.msra.mxu0 0.0
        %286 = vmatprep.subr.mxu0 0.0
        %287 = vmatpush2.msra.mxu0 0.0
        %288 = vmatprep.subr.mxu0 0.0
        %289 = vmatpush2.msra.mxu0 0.0
        %290 = vmatprep.subr.mxu0 0.0
        %291 = vmatpush2.msra.mxu0 0.0
        %292 = vmatprep.subr.mxu0 0.0
        %293 = vmatpush2.msra.mxu0 0.0
        %294 = vmatprep.subr.mxu0 0.0
        %295 = vmatpush2.msra.mxu0 0.0
        %296 = vmatprep.mubr.f32.mxu0 0.0
        %297 = vmatmul.mubr.f32.gmra.mxu0 %v230
        %v298 = vpop.f32.mrf.mxu0
        %v299 = vadd.f32 0.0, %v298
        %v300 = vpop.f32.mrf.mxu0
        %301 = vdwg.mxu0
        %v302 = vld [vmem:[%s3] sm:$0xff]
        %v303 = vld [vmem:[%s3 + $0x8] sm:$0xff]
        %v304 = vld [vmem:[%s3 + $0x10] sm:$0xff]
        %v305 = vld [vmem:[%s3 + $0x18] sm:$0xff]
        %vm306 = vcmask 261120
        %v308 = vsel %vm306, %v299, 0
        %310 = vmatprep.subr.mxu0 0.0
        %311 = vmatpush1.msra.mxu0 0.0
        %312 = vmatprep.subr.mxu0 0.0
        %313 = vmatpush1.msra.mxu0 0.0
        %314 = vmatprep.subr.mxu0 0.0
        %315 = vmatpush1.msra.mxu0 0.0
        %316 = vmatprep.subr.mxu0 0.0
        %317 = vmatpush1.msra.mxu0 0.0
        %318 = vmatprep.subr.mxu0 0.0
        %319 = vmatpush1.msra.mxu0 0.0
        %320 = vmatprep.subr.mxu0 0.0
        %321 = vmatpush1.msra.mxu0 0.0
        %322 = vmatprep.subr.mxu0 0.0
        %323 = vmatpush1.msra.mxu0 0.0
        %324 = vmatprep.subr.mxu0 0.0
        %325 = vmatpush1.msra.mxu0 0.0
        %326 = vmatprep.subr.mxu0 0.0
        %327 = vmatpush1.msra.mxu0 0.0
        %328 = vmatprep.subr.mxu0 0.0
        %329 = vmatpush1.msra.mxu0 0.0
        %330 = vmatprep.subr.mxu0 0.0
        %331 = vmatpush1.msra.mxu0 0.0
        %332 = vmatprep.subr.mxu0 0.0
        %333 = vmatpush1.msra.mxu0 0.0
        %334 = vmatprep.subr.mxu0 0.0
        %335 = vmatpush1.msra.mxu0 %v305
        %336 = vmatprep.subr.mxu0 0.0
        %337 = vmatpush1.msra.mxu0 %v304
        %338 = vmatprep.subr.mxu0 0.0
        %339 = vmatpush1.msra.mxu0 %v303
        %340 = vmatprep.subr.mxu0 0.0
        %341 = vmatpush1.msra.mxu0 %v302
        %342 = vmatprep.subr.mxu0 0.0
        %343 = vmatpush2.msra.mxu0 0.0
        %344 = vmatprep.subr.mxu0 0.0
        %345 = vmatpush2.msra.mxu0 0.0
        %346 = vmatprep.subr.mxu0 0.0
        %347 = vmatpush2.msra.mxu0 0.0
        %348 = vmatprep.subr.mxu0 0.0
        %349 = vmatpush2.msra.mxu0 0.0
        %350 = vmatprep.subr.mxu0 0.0
        %351 = vmatpush2.msra.mxu0 0.0
        %352 = vmatprep.subr.mxu0 0.0
        %353 = vmatpush2.msra.mxu0 0.0
        %354 = vmatprep.subr.mxu0 0.0
        %355 = vmatpush2.msra.mxu0 0.0
        %356 = vmatprep.subr.mxu0 0.0
        %357 = vmatpush2.msra.mxu0 0.0
        %358 = vmatprep.subr.mxu0 0.0
        %359 = vmatpush2.msra.mxu0 0.0
        %360 = vmatprep.subr.mxu0 0.0
        %361 = vmatpush2.msra.mxu0 0.0
        %362 = vmatprep.subr.mxu0 0.0
        %363 = vmatpush2.msra.mxu0 0.0
        %364 = vmatprep.subr.mxu0 0.0
        %365 = vmatpush2.msra.mxu0 0.0
        %366 = vmatprep.subr.mxu0 0.0
        %367 = vmatpush2.msra.mxu0 0.0
        %368 = vmatprep.subr.mxu0 0.0
        %369 = vmatpush2.msra.mxu0 0.0
        %370 = vmatprep.subr.mxu0 0.0
        %371 = vmatpush2.msra.mxu0 0.0
        %372 = vmatprep.subr.mxu0 0.0
        %373 = vmatpush2.msra.mxu0 0.0
        %374 = vmatprep.mubr.f32.mxu0 0.0
        %375 = vmatmul.mubr.f32.gmra.mxu0 %v308
        %v376 = vpop.f32.mrf.mxu0
        %v377 = vadd.f32 0.0, %v376
        %v378 = vpop.f32.mrf.mxu0
        %379 = vdwg.mxu0
        %381 = vrot.lane.b32.xlu0 %v377, 127
        %v382 = vpop.permute.xlu0 %381
        %384 = vxpose.xlu0.b32.start [1/16] %v382, 128
        %385 = vxpose.xlu0.b32.cont [2/16] 0.0, 128
        %386 = vxpose.xlu0.b32.cont [3/16] 0.0, 128
        %387 = vxpose.xlu0.b32.cont [4/16] 0.0, 128
        %388 = vxpose.xlu0.b32.cont [5/16] 0.0, 128
        %389 = vxpose.xlu0.b32.cont [6/16] 0.0, 128
        %390 = vxpose.xlu0.b32.cont [7/16] 0.0, 128
        %391 = vxpose.xlu0.b32.cont [8/16] 0.0, 128
        %392 = vxpose.xlu0.b32.cont [9/16] 0.0, 128
        %393 = vxpose.xlu0.b32.cont [10/16] 0.0, 128
        %394 = vxpose.xlu0.b32.cont [11/16] 0.0, 128
        %395 = vxpose.xlu0.b32.cont [12/16] 0.0, 128
        %396 = vxpose.xlu0.b32.cont [13/16] 0.0, 128
        %397 = vxpose.xlu0.b32.cont [14/16] 0.0, 128
        %398 = vxpose.xlu0.b32.cont [15/16] 0.0, 128
        %399 = vxpose.xlu0.b32.end [16/16] 0.0, 128
        %v400 = vpop.trf.xlu0
        %v401 = vpop.trf.xlu0
        %v402 = vpop.trf.xlu0
        %v403 = vpop.trf.xlu0
        %v404 = vpop.trf.xlu0
        %v405 = vpop.trf.xlu0
        %v406 = vpop.trf.xlu0
        %v407 = vpop.trf.xlu0
        %v408 = vpop.trf.xlu0
        %v409 = vpop.trf.xlu0
        %v410 = vpop.trf.xlu0
        %v411 = vpop.trf.xlu0
        %v412 = vpop.trf.xlu0
        %v413 = vpop.trf.xlu0
        %v414 = vpop.trf.xlu0
        %v415 = vpop.trf.xlu0
        %416 = vset.pattern.permute.xlu0 0
        %417 = vperm.xlu0 %416, %v377
        %v418 = vpop.permute.xlu0 %417
        %v420 = vlaneseq
        %v421 = vshrl.u32 %v420, 7
        %v422 = vsub.s32 0, %v421
        %v423 = vrot.slane %v400, %v422
        %v424 = vadd.f32 %v418, %v423
        %vm425 = vcmp.gt.f32.partialorder %v424, 0.0
        %v426 = vmul.f32 %v424, 0.2
        %v427 = vsel %vm425, %v424, %v426
        %v428 = vld [vmem:[%s224] sm:$0xff]
        %vm429 = vcmp.gt.f32.partialorder %v428, 0.0
        %v430 = vsel %vm429, %v427, -1e+12
        %vm431 = vcmask 64512
        %v432 = vsel %vm431, %v430, -inf
        %433 = vmax.xlane.f32.xlu0 %v432
        %v434 = vpop.xlane.xlu0 %433
        %v435 = vsub.f32 %v430, %v434
        %v436 = vmul.f32 %v435, 1.442695
        %v437 = vpow.pop %v436
        %v438 = vsel %vm431, %v437, 0.0
        %439 = vadd.xlane.f32.xlu0 %v438
        %v440 = vpop.xlane.xlu0 %439
        %v441 = vrcp.pop %v440
        %v442 = vmul.f32 %v437, %v441
        %v444 = vsel %vm431, %v442, 0
        %446 = vmatprep.subr.mxu0 0.0
        %447 = vmatpush1.msra.mxu0 0.0
        %448 = vmatprep.subr.mxu0 0.0
        %449 = vmatpush1.msra.mxu0 0.0
        %450 = vmatprep.subr.mxu0 0.0
        %451 = vmatpush1.msra.mxu0 0.0
        %452 = vmatprep.subr.mxu0 0.0
        %453 = vmatpush1.msra.mxu0 0.0
        %454 = vmatprep.subr.mxu0 0.0
        %455 = vmatpush1.msra.mxu0 0.0
        %456 = vmatprep.subr.mxu0 0.0
        %457 = vmatpush1.msra.mxu0 0.0
        %458 = vmatprep.subr.mxu0 0.0
        %459 = vmatpush1.msra.mxu0 0.0
        %460 = vmatprep.subr.mxu0 0.0
        %461 = vmatpush1.msra.mxu0 0.0
        %462 = vmatprep.subr.mxu0 0.0
        %463 = vmatpush1.msra.mxu0 0.0
        %464 = vmatprep.subr.mxu0 0.0
        %465 = vmatpush1.msra.mxu0 0.0
        %466 = vmatprep.subr.mxu0 0.0
        %467 = vmatpush1.msra.mxu0 0.0
        %468 = vmatprep.subr.mxu0 0.0
        %469 = vmatpush1.msra.mxu0 0.0
        %470 = vmatprep.subr.mxu0 0.0
        %471 = vmatpush1.msra.mxu0 0.0
        %472 = vmatprep.subr.mxu0 0.0
        %473 = vmatpush1.msra.mxu0 0.0
        %474 = vmatprep.subr.mxu0 0.0
        %475 = vmatpush1.msra.mxu0 0.0
        %476 = vmatprep.subr.mxu0 0.0
        %477 = vmatpush1.msra.mxu0 %v299
        %478 = vmatprep.subr.mxu0 0.0
        %479 = vmatpush2.msra.mxu0 0.0
        %480 = vmatprep.subr.mxu0 0.0
        %481 = vmatpush2.msra.mxu0 0.0
        %482 = vmatprep.subr.mxu0 0.0
        %483 = vmatpush2.msra.mxu0 0.0
        %484 = vmatprep.subr.mxu0 0.0
        %485 = vmatpush2.msra.mxu0 0.0
        %486 = vmatprep.subr.mxu0 0.0
        %487 = vmatpush2.msra.mxu0 0.0
        %488 = vmatprep.subr.mxu0 0.0
        %489 = vmatpush2.msra.mxu0 0.0
        %490 = vmatprep.subr.mxu0 0.0
        %491 = vmatpush2.msra.mxu0 0.0
        %492 = vmatprep.subr.mxu0 0.0
        %493 = vmatpush2.msra.mxu0 0.0
        %494 = vmatprep.subr.mxu0 0.0
        %495 = vmatpush2.msra.mxu0 0.0
        %496 = vmatprep.subr.mxu0 0.0
        %497 = vmatpush2.msra.mxu0 0.0
        %498 = vmatprep.subr.mxu0 0.0
        %499 = vmatpush2.msra.mxu0 0.0
        %500 = vmatprep.subr.mxu0 0.0
        %501 = vmatpush2.msra.mxu0 0.0
        %502 = vmatprep.subr.mxu0 0.0
        %503 = vmatpush2.msra.mxu0 0.0
        %504 = vmatprep.subr.mxu0 0.0
        %505 = vmatpush2.msra.mxu0 0.0
        %506 = vmatprep.subr.mxu0 0.0
        %507 = vmatpush2.msra.mxu0 0.0
        %508 = vmatprep.subr.mxu0 0.0
        %509 = vmatpush2.msra.mxu0 0.0
        %510 = vmatprep.mubr.f32.mxu0 0.0
        %511 = vmatmul.mubr.f32.gmra.mxu0 %v444
        %v512 = vpop.f32.mrf.mxu0
        %v513 = vadd.f32 0.0, %v512
        %v514 = vpop.f32.mrf.mxu0
        %515 = vdwg.mxu0
        %v516 = vmax.f32 %v513, 0.0
        %517 = vst.msk [vmem:[%s216] sm:$0xff] %vm306, %v516
        %s518 = sand.u32 %s121, 1
        %s519 = scalar_lea.sflag [#allocation4], %s518
        %s520 = sand.u32 %s121, 1
        %s521 = smul.addr %s520, 8
        %s522 = scalar_lea.vmem [#allocation5], %s521
        // Predicated region
        $region41: #{tpu_custom_call.1} parent=35 // pred_check
          %p523 = pneg %p131
        $region42: #{tpu_custom_call.1} parent=35 // pred_check_branch
          %525 = sbr.rel (%p523) target = $region44
        $region43: #{tpu_custom_call.1} parent=35 // pred_region
          %s527 = ssub.s32 128, 128
          %528 = vsyncadd %s519, %s527
          %s529 = smul.addr %s19, 128
          %s530 = scalar_lea.hbm %s4, %s529
          %s532 = sshll.u32 %s522, 4
          %s533 = int_to_ptr.vmem [resolvable:$true] %s532
          %535 = dma.vmem_to_hbm [thread:$0]  %s533, 128, %s530, %s519
        $region44: #{tpu_custom_call.1} parent=35 // pred_fallthru
          _
      $region36: #{tpu_custom_call.1} parent=5 // pred_fallthru
        _
      %p536 = scmp.le.s32.totalorder 2, %s14
      // Predicated region
      $region45: #{tpu_custom_call.1} parent=5 // pred_check
        %p537 = pneg %p536
      $region46: #{tpu_custom_call.1} parent=5 // pred_check_branch
        %539 = sbr.rel (%p537) target = $region48
      $region47: #{tpu_custom_call.1} parent=5 // pred_region
        %s540 = ssub.s32 %s14, 2
        // Predicated region
        $region49: #{tpu_custom_call.1} parent=47 // pred_check
          %p541 = pneg %p137
        $region50: #{tpu_custom_call.1} parent=47 // pred_check_branch
          %543 = sbr.rel (%p541) target = $region52
        $region51: #{tpu_custom_call.1} parent=47 // pred_region
          %s544 = sand.u32 %s122, 1
          %s545 = scalar_lea.sflag [#allocation4], %s544
          %s546 = sand.u32 %s122, 1
          %s547 = smul.addr %s546, 8
          %s548 = scalar_lea.vmem [#allocation5], %s547
          %549 = dma.done %s545, 128
        $region52: #{tpu_custom_call.1} parent=47 // pred_fallthru
          _
      $region48: #{tpu_custom_call.1} parent=5 // pred_fallthru
        _
    $region6: #{tpu_custom_call.1} parent=1 // loop_footer
      %s18 = sadd.s32 1, %s14
    $region7: #{tpu_custom_call.1} parent=1 // loop_footer_branch
      %13 = sbr.rel target = $region3
    $region8: #{tpu_custom_call.1} parent=1 // loop_exit
      _
    %550 = vsyncpa [#allocation3], 1
    %s551 = scalar_lea.sflag [#allocation3], 1
    %552 = vsyncpa %s551, 1
    %553 = vsyncpa [#allocation4], 1
    %s554 = scalar_lea.sflag [#allocation4], 1
    %555 = vsyncpa %s554, 1

</llo_original>
